<compile_context>
chip_gen: v6e
topology: v6e:2x2x1
jax: 0.10.0
libtpu: 0.0.40
codegen_flags: <defaults>
</compile_context>

<pallas_src>
import jax
import jax.numpy as jnp
from jax.experimental import pallas as pl
from jax.experimental.pallas import tpu as pltpu

# Lane chunk per grid step for the dense path (multiple of 128).
# TODO(synk): on v7x, raise to ~128K lanes and add a leading "parallel" grid
# axis splitting N across the two TensorCores with per-core partial sums.
_CHUNK_LANES = 64 * 1024

# new-row -> original-channel permutation:
# [z0_b0, z0_b1, z1_b0, z1_b1, sin_b0, sin_b1, cos_b0, cos_b1]
_ROW_PERM = (0, 4, 1, 5, 2, 6, 3, 7)


def _round_up(x, m):
    return ((x + m - 1) // m) * m


def _binrot_loss_kernel(inv_n_ref, x_ref, out_ref, acc_ref):
    """Processes one (16, L) lane chunk; accumulates 6 partial sums."""
    @pl.when(pl.program_id(0) == 0)
    def _init():
        acc_ref[...] = jnp.zeros_like(acc_ref)

    z_a = x_ref[0:2, :]        # class-0 logits, bins stacked on sublanes
    z_b = x_ref[2:4, :]        # class-1 logits
    p_sin = x_ref[4:6, :]
    p_cos = x_ref[6:8, :]
    sgn_m = x_ref[8:10, :]     # mask * (1 - 2*rotbin); 0 on padded lanes
    t_res = x_ref[10:12, :]
    sel = x_ref[12:14, :]      # (rotbin != 0) on real rows, 0 on padding
    valid = x_ref[14:15, :]    # 1 real row, 0 lane padding

    # 2-class cross entropy in sign-folded softplus form:
    #   lse(z0*m, z1*m) - z_t*m = softplus((z1 - z0) * m * (1 - 2*t)),
    # evaluated stably as max(d, 0) + log(1 + exp(-|d|)).
    d = (z_b - z_a) * sgn_m
    ce_rows = (jnp.maximum(d, 0.0)
               + jnp.log(1.0 + jnp.exp(-jnp.abs(d)))) * valid          # (2, L)

    # smooth-L1 residuals on rows with rotbin != 0, both bins at once.
    def _smooth_l1(p, t):
        a = jnp.abs(p - t)
        return jnp.where(a < 1.0, 0.5 * a * a, a - 0.5)

    res_rows = (_smooth_l1(p_sin, jnp.sin(t_res))
                + _smooth_l1(p_cos, jnp.cos(t_res))) * sel             # (2, L)

    # Single fused cross-lane reduction; rows = [ce0, ce1, res0, res1, n0, n1]
    stacked = jnp.concatenate([ce_rows, res_rows, sel], axis=0)        # (6, L)
    acc_ref[...] += jnp.sum(stacked, axis=-1, keepdims=True)           # (6, 1)

    @pl.when(pl.program_id(0) == pl.num_programs(0) - 1)
    def _finalize():
        acc = acc_ref[...]                                             # (6, 1)
        ce_sum = acc[0:1, :] + acc[1:2, :]
        r0, r1 = acc[2:3, :], acc[3:4, :]
        c0, c1 = acc[4:5, :], acc[5:6, :]
        res0 = jnp.where(c0 > 0.0, r0 / jnp.maximum(c0, 1.0), 0.0)
        res1 = jnp.where(c1 > 0.0, r1 / jnp.maximum(c1, 1.0), 0.0)
        out_ref[...] = ce_sum * inv_n_ref[0, 0] + res0 + res1


def _rot_loss_pallas(packed, inv_n, num_chunks, chunk_lanes):
    out = pl.pallas_call(
        _binrot_loss_kernel,
        out_shape=jax.ShapeDtypeStruct((1, 1), jnp.float32),
        grid=(num_chunks,),
        in_specs=[
            pl.BlockSpec(memory_space=pltpu.MemorySpace.SMEM),   # 1/N scalar
            pl.BlockSpec((16, chunk_lanes), lambda i: (0, i)),   # packed chunk
        ],
        out_specs=pl.BlockSpec((1, 1), lambda i: (0, 0)),
        scratch_shapes=[pltpu.VMEM((6, 1), jnp.float32)],
        compiler_params=pltpu.CompilerParams(
            dimension_semantics=("arbitrary",)),
    )(inv_n, packed)
    return out[0, 0]


def bin_rot_loss(output, mask, ind, rotbin, rotres):
    """Forward pass of BinRotLoss. output: NCHW [B, 8, H, W]."""
    B, C, H, W = output.shape
    K = ind.shape[1]
    n = B * K

    # _tranpose_and_gather_feat, gathering directly from NCHW (no full
    # feature-map NHWC transpose): feat[b, c, ind[b, k]] == NHWC gather.
    feat = output.reshape(B, C, H * W)
    idx = jnp.broadcast_to(ind[:, None, :].astype(jnp.int32), (B, C, K))
    pred = jnp.take_along_axis(feat, idx, axis=2)                   # (B, 8, K)
    pred_cn = jnp.transpose(pred, (1, 0, 2)).reshape(C, n)          # (8, N)
    pred_cn = jnp.take(pred_cn, jnp.asarray(_ROW_PERM, jnp.int32),
                       axis=0).astype(jnp.float32)                  # reordered

    # Targets, precomputed so the kernel needs no selects on the CE path.
    tbin = rotbin.reshape(n, 2).astype(jnp.float32).T               # (2, N)
    tres = rotres.reshape(n, 2).astype(jnp.float32).T               # (2, N)
    m = mask.reshape(1, n).astype(jnp.float32)                      # (1, N)
    sgn_m = m * (1.0 - 2.0 * tbin)                                  # (2, N)
    sel = (tbin != 0.0).astype(jnp.float32)                         # (2, N)
    valid = jnp.ones((1, n), jnp.float32)
    zrow = jnp.zeros((1, n), jnp.float32)

    # One tile-aligned packed operand (16, N), one pad, one input DMA.
    packed = jnp.concatenate([pred_cn, sgn_m, tres, sel, valid, zrow], axis=0)

    chunk = min(_CHUNK_LANES, _round_up(n, 128))
    npad = _round_up(n, chunk)
    if npad != n:
        # Zero padding => sgn_m = sel = valid = 0 on padded lanes, so they
        # contribute nothing inside the kernel.
        packed = jnp.pad(packed, ((0, 0), (0, npad - n)))

    inv_n = jnp.full((1, 1), 1.0 / float(n), jnp.float32)
    return _rot_loss_pallas(packed, inv_n, npad // chunk, chunk)


def _rot_loss_ref(output, mask, ind, rotbin, rotres):
    """Pure-JAX reference mirroring the PyTorch semantics (for validation)."""
    B, C, H, W = output.shape
    K = ind.shape[1]
    feat = jnp.transpose(output, (0, 2, 3, 1)).reshape(B, H * W, C)
    idx = jnp.broadcast_to(ind[:, :, None].astype(jnp.int32), (B, K, C))
    pred = jnp.take_along_axis(feat, idx, axis=1).reshape(-1, 8).astype(jnp.float32)
    tbin = rotbin.reshape(-1, 2).astype(jnp.int32)
    tres = rotres.reshape(-1, 2).astype(jnp.float32)
    m = mask.reshape(-1, 1).astype(jnp.float32)

    def ce(logits, tgt):
        logits = logits * m
        lse = jax.nn.logsumexp(logits, axis=1)
        zt = jnp.take_along_axis(logits, tgt[:, None], axis=1)[:, 0]
        return jnp.mean(lse - zt)

    lb1 = ce(pred[:, 0:2], tbin[:, 0])
    lb2 = ce(pred[:, 4:6], tbin[:, 1])

    def sl1(x, t):
        d = jnp.abs(x - t)
        return jnp.where(d < 1.0, 0.5 * d * d, d - 0.5)

    def res(psin, pcos, tr, bc):
        s = (bc != 0).astype(jnp.float32)
        nsel = jnp.sum(s)
        l = jnp.sum(sl1(psin, jnp.sin(tr)) * s) + jnp.sum(sl1(pcos, jnp.cos(tr)) * s)
        return jnp.where(nsel > 0, l / jnp.maximum(nsel, 1.0), 0.0)

    lr = res(pred[:, 2], pred[:, 3], tres[:, 0], tbin[:, 0]) \
        + res(pred[:, 6], pred[:, 7], tres[:, 1], tbin[:, 1])
    return lb1 + lb2 + lr


if __name__ == "__main__":
    key = jax.random.PRNGKey(0)
    B, C, H, W, K = 2, 8, 16, 16, 8
    k1, k2, k3, k4, k5 = jax.random.split(key, 5)

    output = jax.random.normal(k1, (B, C, H, W), dtype=jnp.float32)
    ind = jax.random.randint(k2, (B, K), 0, H * W, dtype=jnp.int32)
    mask = (jax.random.uniform(k3, (B, K)) > 0.3).astype(jnp.float32)
    rotbin = jax.random.randint(k4, (B, K, 2), 0, 2, dtype=jnp.int32)
    rotres = jax.random.uniform(k5, (B, K, 2), minval=-3.14, maxval=3.14,
                                dtype=jnp.float32)

    loss = jax.block_until_ready(bin_rot_loss(output, mask, ind, rotbin, rotres))

    ref = _rot_loss_ref(output, mask, ind, rotbin, rotres)
    assert jnp.allclose(loss, ref, rtol=1e-5, atol=1e-5), (loss, ref)

    print("KERNEL_OK")
</pallas_src>

<mosaic_0001>
module attributes {stable_mosaic.version = 11 : i64} {
  func.func @_binrot_loss_kernel(%arg0: i32, %arg1: memref<1x1xf32, #tpu.memory_space<smem>>, %arg2: memref<16x128xf32, #tpu.memory_space<vmem>>, %arg3: memref<1x1xf32, #tpu.memory_space<vmem>>, %arg4: memref<6x1xf32, #tpu.memory_space<vmem>>) attributes {dimension_semantics = [#tpu.dimension_semantics<arbitrary>], iteration_bounds = array<i64: 1>, scalar_prefetch = 0 : i64, scratch_operands = 1 : i64, tpu.core_type = #tpu.core_type<tc>, window_params = [{transform_indices = @transform_0, window_bounds = array<i64: 1, 1>}, {transform_indices = @transform_1, window_bounds = array<i64: 16, 128>}, {pipeline_mode = #tpu.pipeline_mode<synchronous>, transform_indices = @transform_2, window_bounds = array<i64: 1, 1>}]} {
    %c0_i32 = arith.constant 0 : i32
    %0 = arith.cmpi eq, %arg0, %c0_i32 : i32
    %1 = arith.extui %0 : i1 to i32
    %c0_i32_0 = arith.constant 0 : i32
    %2 = arith.cmpi ne, %1, %c0_i32_0 : i32
    scf.if %2 {
      %cst_24 = arith.constant 0.000000e+00 : f32
      %58 = vector.broadcast %cst_24 : f32 to vector<6x1xf32>
      %c0_25 = arith.constant 0 : index
      %c0_26 = arith.constant 0 : index
      %59 = vector.load %arg4[%c0_25, %c0_26] : memref<6x1xf32, #tpu.memory_space<vmem>>, vector<6x1xf32>
      tpu.vector_store %arg4[%c0_25, %c0_26], %58 {strides = array<i32>} : memref<6x1xf32, #tpu.memory_space<vmem>>, vector<6x1xf32>,
    } else {
    }
    %c0 = arith.constant 0 : index
    %c0_1 = arith.constant 0 : index
    %3 = vector.load %arg2[%c0, %c0_1] : memref<16x128xf32, #tpu.memory_space<vmem>>, vector<2x128xf32>
    %c2 = arith.constant 2 : index
    %c0_2 = arith.constant 0 : index
    %4 = vector.load %arg2[%c2, %c0_2] : memref<16x128xf32, #tpu.memory_space<vmem>>, vector<2x128xf32>
    %c4 = arith.constant 4 : index
    %c0_3 = arith.constant 0 : index
    %5 = vector.load %arg2[%c4, %c0_3] : memref<16x128xf32, #tpu.memory_space<vmem>>, vector<2x128xf32>
    %c6 = arith.constant 6 : index
    %c0_4 = arith.constant 0 : index
    %6 = vector.load %arg2[%c6, %c0_4] : memref<16x128xf32, #tpu.memory_space<vmem>>, vector<2x128xf32>
    %c8 = arith.constant 8 : index
    %c0_5 = arith.constant 0 : index
    %7 = vector.load %arg2[%c8, %c0_5] : memref<16x128xf32, #tpu.memory_space<vmem>>, vector<2x128xf32>
    %c10 = arith.constant 10 : index
    %c0_6 = arith.constant 0 : index
    %8 = vector.load %arg2[%c10, %c0_6] : memref<16x128xf32, #tpu.memory_space<vmem>>, vector<2x128xf32>
    %c12 = arith.constant 12 : index
    %c0_7 = arith.constant 0 : index
    %9 = vector.load %arg2[%c12, %c0_7] : memref<16x128xf32, #tpu.memory_space<vmem>>, vector<2x128xf32>
    %c14 = arith.constant 14 : index
    %c0_8 = arith.constant 0 : index
    %10 = vector.load %arg2[%c14, %c0_8] : memref<16x128xf32, #tpu.memory_space<vmem>>, vector<1x128xf32>
    %11 = arith.subf %4, %3 : vector<2x128xf32>
    %12 = arith.mulf %11, %7 : vector<2x128xf32>
    %cst = arith.constant 0.000000e+00 : f32
    %13 = vector.broadcast %cst : f32 to vector<2x128xf32>
    %14 = arith.maximumf %12, %13 : vector<2x128xf32>
    %15 = math.absf %12 : vector<2x128xf32>
    %cst_9 = arith.constant 0.000000e+00 : f32
    %16 = vector.broadcast %cst_9 : f32 to vector<2x128xf32>
    %17 = arith.subf %16, %15 : vector<2x128xf32>
    %18 = math.exp %17 : vector<2x128xf32>
    %cst_10 = arith.constant 1.000000e+00 : f32
    %19 = vector.broadcast %cst_10 : f32 to vector<2x128xf32>
    %20 = arith.addf %19, %18 : vector<2x128xf32>
    %21 = math.log %20 : vector<2x128xf32>
    %22 = arith.addf %14, %21 : vector<2x128xf32>
    %23 = vector.broadcast %10 : vector<1x128xf32> to vector<2x128xf32>
    %24 = arith.mulf %22, %23 : vector<2x128xf32>
    %25 = math.sin %8 : vector<2x128xf32>
    %26 = arith.subf %5, %25 : vector<2x128xf32>
    %27 = math.absf %26 : vector<2x128xf32>
    %cst_11 = arith.constant 1.000000e+00 : f32
    %28 = vector.broadcast %cst_11 : f32 to vector<2x128xf32>
    %29 = arith.cmpf olt, %27, %28 : vector<2x128xf32>
    %cst_12 = arith.constant 5.000000e-01 : f32
    %30 = vector.broadcast %cst_12 : f32 to vector<2x128xf32>
    %31 = arith.mulf %30, %27 : vector<2x128xf32>
    %32 = arith.mulf %31, %27 : vector<2x128xf32>
    %cst_13 = arith.constant 5.000000e-01 : f32
    %33 = vector.broadcast %cst_13 : f32 to vector<2x128xf32>
    %34 = arith.subf %27, %33 : vector<2x128xf32>
    %35 = arith.select %29, %32, %34 : vector<2x128xi1>, vector<2x128xf32>
    %36 = math.cos %8 : vector<2x128xf32>
    %37 = arith.subf %6, %36 : vector<2x128xf32>
    %38 = math.absf %37 : vector<2x128xf32>
    %cst_14 = arith.constant 1.000000e+00 : f32
    %39 = vector.broadcast %cst_14 : f32 to vector<2x128xf32>
    %40 = arith.cmpf olt, %38, %39 : vector<2x128xf32>
    %cst_15 = arith.constant 5.000000e-01 : f32
    %41 = vector.broadcast %cst_15 : f32 to vector<2x128xf32>
    %42 = arith.mulf %41, %38 : vector<2x128xf32>
    %43 = arith.mulf %42, %38 : vector<2x128xf32>
    %cst_16 = arith.constant 5.000000e-01 : f32
    %44 = vector.broadcast %cst_16 : f32 to vector<2x128xf32>
    %45 = arith.subf %38, %44 : vector<2x128xf32>
    %46 = arith.select %40, %43, %45 : vector<2x128xi1>, vector<2x128xf32>
    %47 = arith.addf %35, %46 : vector<2x128xf32>
    %48 = arith.mulf %47, %9 : vector<2x128xf32>
    %49 = tpu.concatenate %24, %48, %9 in 0 : vector<2x128xf32>, vector<2x128xf32>, vector<2x128xf32> -> vector<6x128xf32>
    %c0_17 = arith.constant 0 : index
    %c0_18 = arith.constant 0 : index
    %50 = vector.load %arg4[%c0_17, %c0_18] : memref<6x1xf32, #tpu.memory_space<vmem>>, vector<6x1xf32>
    %cst_19 = arith.constant dense<0.000000e+00> : vector<6xf32>
    %51 = vector.multi_reduction <add>, %49, %cst_19 [1] : vector<6x128xf32> to vector<6xf32>
    %52 = vector.shape_cast %51 : vector<6xf32> to vector<6x1xf32>
    %53 = arith.addf %50, %52 : vector<6x1xf32>
    %c0_20 = arith.constant 0 : index
    %c0_21 = arith.constant 0 : index
    %54 = vector.load %arg4[%c0_20, %c0_21] : memref<6x1xf32, #tpu.memory_space<vmem>>, vector<6x1xf32>
    tpu.vector_store %arg4[%c0_20, %c0_21], %53 {strides = array<i32>} : memref<6x1xf32, #tpu.memory_space<vmem>>, vector<6x1xf32>,
    %c0_i32_22 = arith.constant 0 : i32
    %55 = arith.cmpi eq, %arg0, %c0_i32_22 : i32
    %56 = arith.extui %55 : i1 to i32
    %c0_i32_23 = arith.constant 0 : i32
    %57 = arith.cmpi ne, %56, %c0_i32_23 : i32
    scf.if %57 {
      %c0_24 = arith.constant 0 : index
      %c0_25 = arith.constant 0 : index
      %58 = vector.load %arg4[%c0_24, %c0_25] : memref<6x1xf32, #tpu.memory_space<vmem>>, vector<6x1xf32>
      %59 = vector.extract_strided_slice %58 {offsets = [0, 0], sizes = [1, 1], strides = [1, 1]} : vector<6x1xf32> to vector<1x1xf32>
      %60 = vector.extract_strided_slice %58 {offsets = [1, 0], sizes = [1, 1], strides = [1, 1]} : vector<6x1xf32> to vector<1x1xf32>
      %61 = arith.addf %59, %60 : vector<1x1xf32>
      %62 = vector.extract_strided_slice %58 {offsets = [2, 0], sizes = [1, 1], strides = [1, 1]} : vector<6x1xf32> to vector<1x1xf32>
      %63 = vector.extract_strided_slice %58 {offsets = [3, 0], sizes = [1, 1], strides = [1, 1]} : vector<6x1xf32> to vector<1x1xf32>
      %64 = vector.extract_strided_slice %58 {offsets = [4, 0], sizes = [1, 1], strides = [1, 1]} : vector<6x1xf32> to vector<1x1xf32>
      %65 = vector.extract_strided_slice %58 {offsets = [5, 0], sizes = [1, 1], strides = [1, 1]} : vector<6x1xf32> to vector<1x1xf32>
      %cst_26 = arith.constant 0.000000e+00 : f32
      %66 = vector.broadcast %cst_26 : f32 to vector<1x1xf32>
      %67 = arith.cmpf ogt, %64, %66 : vector<1x1xf32>
      %cst_27 = arith.constant 1.000000e+00 : f32
      %68 = vector.broadcast %cst_27 : f32 to vector<1x1xf32>
      %69 = arith.maximumf %64, %68 : vector<1x1xf32>
      %70 = arith.divf %62, %69 : vector<1x1xf32>
      %cst_28 = arith.constant 0.000000e+00 : f32
      %71 = vector.broadcast %cst_28 : f32 to vector<1x1xf32>
      %72 = arith.select %67, %70, %71 : vector<1x1xi1>, vector<1x1xf32>
      %cst_29 = arith.constant 0.000000e+00 : f32
      %73 = vector.broadcast %cst_29 : f32 to vector<1x1xf32>
      %74 = arith.cmpf ogt, %65, %73 : vector<1x1xf32>
      %cst_30 = arith.constant 1.000000e+00 : f32
      %75 = vector.broadcast %cst_30 : f32 to vector<1x1xf32>
      %76 = arith.maximumf %65, %75 : vector<1x1xf32>
      %77 = arith.divf %63, %76 : vector<1x1xf32>
      %cst_31 = arith.constant 0.000000e+00 : f32
      %78 = vector.broadcast %cst_31 : f32 to vector<1x1xf32>
      %79 = arith.select %74, %77, %78 : vector<1x1xi1>, vector<1x1xf32>
      %c0_32 = arith.constant 0 : index
      %c0_33 = arith.constant 0 : index
      %80 = memref.load %arg1[%c0_32, %c0_33] : memref<1x1xf32, #tpu.memory_space<smem>>
      %81 = vector.broadcast %80 : f32 to vector<1x1xf32>
      %82 = arith.mulf %61, %81 : vector<1x1xf32>
      %83 = arith.addf %82, %72 : vector<1x1xf32>
      %84 = arith.addf %83, %79 : vector<1x1xf32>
      %c0_34 = arith.constant 0 : index
      %c0_35 = arith.constant 0 : index
      %85 = vector.load %arg3[%c0_34, %c0_35] : memref<1x1xf32, #tpu.memory_space<vmem>>, vector<1x1xf32>
      tpu.vector_store %arg3[%c0_34, %c0_35], %84 {strides = array<i32>} : memref<1x1xf32, #tpu.memory_space<vmem>>, vector<1x1xf32>,
    } else {
    }
    return
  }
  func.func @transform_0(%arg0: i32) -> (i32, i32) {
    %c0_i32 = arith.constant 0 : i32
    %c0_i32_0 = arith.constant 0 : i32
    %c0_i32_1 = arith.constant 0 : i32
    return %c0_i32, %c0_i32_0 : i32, i32
  }
  func.func @transform_1(%arg0: i32) -> (i32, i32) {
    %c0_i32 = arith.constant 0 : i32
    %c0_i32_0 = arith.constant 0 : i32
    return %c0_i32, %arg0 : i32, i32
  }
  func.func @transform_2(%arg0: i32) -> (i32, i32) {
    %c0_i32 = arith.constant 0 : i32
    %c0_i32_0 = arith.constant 0 : i32
    %c0_i32_1 = arith.constant 0 : i32
    return %c0_i32, %c0_i32_0 : i32, i32
  }
}

</mosaic_0001>

<llo_original>
// kernel: tpu_custom_call.1
$region0: #{tpu_custom_call.1}
  #allocation0 [shape = 'u32[]', space=smem, size = 0x4, offset = 0x4, fixed_abs, tag = 'smem constant byte address 0x4 - core index']
  #allocation1 [shape = 'u32[144,128]{1,0:T(1,128)}', space=vmem, size = 0x12000, scoped, tag = 'internal scratch']
  #allocation2 [shape = 'f32[6,1]{1,0:T(8,128)}', space=vmem, size = 0x1000, scoped, tag = 'scratch operand']
  #allocation3 [shape = 'f32[1,1]{1,0:T(1,128)S(6)}', space=smem, size = 0x200, scoped, tag = 'scoped memory for tpu_custom_call.1']
  %s0 = inlined_call_operand.<no memory space> [shape: f32[1,1], index: 0, kind: input, shape index: {}]
  %s1 = inlined_call_operand.hbm [shape: f32[16,128], index: 1, kind: input, shape index: {}]
  %s2 = inlined_call_operand.hbm [shape: f32[1,1], index: 2, kind: output, shape index: {}]
  %s3 = sld [smem:[#allocation0]]
  $region30: #{tpu_custom_call.1} parent=0
    _
  %s5 = ssub.s32 1, %s3
  %s6 = scalar_select 0, %s5, %s3
  %7 = sst [smem:[#allocation3]] %s0
  $region1: #{tpu_custom_call.1} parent=0
    #allocation4 [shape = 'u8[8192]{0}', space=vmem, size = 0x2000, scoped, tag = 'input window, operand 1, single buffered']
    #allocation5 [shape = 's32[1]{0}', space=sflag, size = 0x4, scoped, tag = 'scoped memory for tpu_custom_call.1']
    #allocation6 [shape = 's32[1]{0}', space=sflag, size = 0x4, scoped, tag = 'scoped memory for tpu_custom_call.1']
    #allocation7 [shape = 'u8[512]{0}', space=vmem, size = 0x400, scoped, tag = 'output window, operand 0, single buffered']
    %8 = vsyncpa [#allocation5], 0
    %9 = vsyncpa [#allocation6], 0
    // Predicated region
    $region2: #{tpu_custom_call.1} parent=1 // pred_check
      _
    $region3: #{tpu_custom_call.1} parent=1 // pred_check_branch
      %11 = sbr.rel (0) target = $region5
    $region4: #{tpu_custom_call.1} parent=1 // pred_region
      _
    $region5: #{tpu_custom_call.1} parent=1 // pred_fallthru
      _
    // Predicated region
    $region6: #{tpu_custom_call.1} parent=1 // pred_check
      _
    $region7: #{tpu_custom_call.1} parent=1 // pred_check_branch
      %13 = sbr.rel (0) target = $region9
    $region8: #{tpu_custom_call.1} parent=1 // pred_region
      %s15 = ssub.s32 256, 256
      %16 = vsyncadd [#allocation5], %s15
      %s17 = sshll.u32 [#allocation4], 4
      %s18 = int_to_ptr.vmem [resolvable:$true] %s17
      %23 = dma.hbm_to_vmem [thread:$0]  %s1, 256, %s18, [#allocation5], 128, 128, 8
    $region9: #{tpu_custom_call.1} parent=1 // pred_fallthru
      _
    // Predicated region
    $region10: #{tpu_custom_call.1} parent=1 // pred_check
      _
    $region11: #{tpu_custom_call.1} parent=1 // pred_check_branch
      %25 = sbr.rel (0) target = $region13
    $region12: #{tpu_custom_call.1} parent=1 // pred_region
      %26 = dma.done [#allocation5], 256
    $region13: #{tpu_custom_call.1} parent=1 // pred_fallthru
      _
    %p27 = scmp.eq.s32.totalorder 0, 0
    // Predicated region
    $region14: #{tpu_custom_call.1} parent=1 // pred_check
      %p28 = pneg %p27
    $region15: #{tpu_custom_call.1} parent=1 // pred_check_branch
      %30 = sbr.rel (%p28) target = $region17
    $region16: #{tpu_custom_call.1} parent=1 // pred_region
      %vm31 = vcmask 5120
      %32 = vst.msk [vmem:[#allocation2] sm:$0x3f] %vm31, 0.0
    $region17: #{tpu_custom_call.1} parent=1 // pred_fallthru
      _
    %v33 = vld [vmem:[#allocation4] sm:$0x3]
    %v34 = vld [vmem:[#allocation4 + $0x2] sm:$0x3]
    %v35 = vld [vmem:[#allocation4 + $0x4] sm:$0x3]
    %v36 = vld [vmem:[#allocation4 + $0x6] sm:$0x3]
    %v37 = vld [vmem:[#allocation4 + $0x8] sm:$0x3]
    %v38 = vld [vmem:[#allocation4 + $0xa] sm:$0x3]
    %v39 = vld [vmem:[#allocation4 + $0xc] sm:$0x3]
    %v40 = vld [vmem:[#allocation4 + $0xe] sm:$0x1]
    %v41 = vsub.f32 %v34, %v33
    %v42 = vmul.f32 %v41, %v37
    %v43 = vmax.f32 %v42, 0.0
    %v44 = vand.u32 2147483647, %v42
    %v45 = vsub.f32 0.0, %v44
    %v46 = vmul.f32 %v45, 1.442695
    %v47 = vpow.pop %v46
    %v48 = vadd.f32 %v47, 1.0
    %v49 = vlog2.pop %v48
    %v50 = vmul.f32 %v49, 0.6931472
    %v51 = vadd.f32 %v43, %v50
    %v52 = vlaneseq
    %v53 = vshrl.u32 %v52, 7
    %v54 = vsub.s32 0, %v53
    %v55 = vrot.slane %v40, %v54
    %v56 = vmul.f32 %v51, %v55
    %v57 = vand.u32 2147483647, %v38
    %vm58 = vcmp.le.f32.partialorder %v57, 0.7853982
    %vm59 = vcmp.lt.s32.totalorder %v38, 0
    %v60 = vand.u32 %v38, 2139095040
    %v61 = vshrl.u32 %v60, 23
    %v62 = vsub.s32 %v61, 127
    %v63 = vand.u32 2147483647, %v38
    %v64 = vand.u32 %v63, 8388607
    %v65 = vor.u32 %v64, 8388608
    %v66 = vsub.s32 0, %v65
    %v67 = vadd.s32 %v62, 1
    %vm68 = vcmp.gt.s32.totalorder %v67, 0
    %v69 = vsel %vm68, %v67, 0
    %v70 = vshrl.u32 %v69, 5
    %v71 = vand.u32 %v69, 31
    %v72 = vsub.s32 32, %v71
    %v73 = vshrl.u32 683565275, %v72
    %v74 = vshll.u32 683565275, %v71
    %v75 = vshrl.u32 2475754826, %v72
    %v76 = vor.u32 %v74, %v75
    %v77 = vshll.u32 2475754826, %v71
    %v78 = vshrl.u32 2131351028, %v72
    %v79 = vor.u32 %v77, %v78
    %v80 = vshll.u32 2131351028, %v71
    %v81 = vshrl.u32 2102212464, %v72
    %v82 = vor.u32 %v80, %v81
    %v83 = vshll.u32 2102212464, %v71
    %v84 = vshrl.u32 920167782, %v72
    %v85 = vor.u32 %v83, %v84
    %v86 = vshll.u32 920167782, %v71
    %v87 = vshrl.u32 1326507024, %v72
    %v88 = vor.u32 %v86, %v87
    %vm89 = vcmp.lt.s32.totalorder %v70, 1
    %vm90 = vcmp.lt.s32.totalorder %v70, 2
    %vm91 = vcmp.lt.s32.totalorder %v70, 3
    %vm92 = vcmp.lt.s32.totalorder %v70, 4
    %v93 = vsel %vm89, %v73, %v76
    %v94 = vsel %vm92, %v82, 2102212464
    %v95 = vsel %vm91, %v79, %v94
    %v96 = vsel %vm90, %v93, %v95
    %v97 = vsel %vm89, %v76, %v79
    %v98 = vsel %vm92, %v85, 920167782
    %v99 = vsel %vm91, %v82, %v98
    %v100 = vsel %vm90, %v97, %v99
    %v101 = vsel %vm89, %v79, %v82
    %v102 = vsel %vm92, %v88, 1326507024
    %v103 = vsel %vm91, %v85, %v102
    %v104 = vsel %vm90, %v101, %v103
    %v105 = vshll.u32 %v65, 8
    %v106 = vmul.u32.u64.compose %v105, %v104
    %v107 = vextract.low.u32 %v106
    %v108 = vextract.high.u32 %v106
    %v109 = vmul.u32.u64.compose %v105, %v100
    %v110 = vextract.low.u32 %v109
    %v111 = vextract.high.u32 %v109
    %v112 = vmul.u32 %v105, %v96
    %v113 = vadd.s32 %v108, %v110
    %vm114 = vc.u32 %v108, %v110
    %v115 = vadd.s32 %v111, 1
    %v116 = vsel %vm114, %v115, %v111
    %v117 = vadd.s32 %v112, %v116
    %v118 = vadd.s32 %v117, 536870912
    %v119 = vshrl.u32 %v118, 30
    %v120 = vshll.u32 %v119, 30
    %v121 = vsub.s32 %v117, %v120
    %vm122 = vcmp.lt.s32.totalorder %v121, 0
    %v123 = vsub.s32 0, %v121
    %v124 = vsel %vm122, %v123, %v121
    %v125 = vclz %v124
    %v126 = vsub.s32 %v125, 2
    %vm127 = vcmp.gt.s32.totalorder 0, %v126
    %v128 = vsel %vm127, 0, %v126
    %v129 = vsub.s32 32, %v128
    %v130 = vshll.u32 %v121, %v128
    %v131 = vshrl.u32 %v113, %v129
    %v132 = vor.u32 %v130, %v131
    %v133 = vsub.s32 4294967266, %v128
    %v134 = vadd.s32 %v133, 127
    %v135 = vshll.u32 %v134, 23
    %v136 = vor.u32 4788187, %v135
    %v137 = vand.u32 2147483647, %v136
    %v139 = vcvt.s32.f32 %v132
    %v140 = vmul.f32 %v139, %v137
    %v141 = vxor.u32 %v140, 2147483648
    %v142 = vsel %vm59, %v141, %v140
    %v143 = vsub.s32 4, %v119
    %v144 = vsel %vm59, %v143, %v119
    %v145 = vsel %vm58, %v38, %v142
    %v146 = vsel %vm58, 0, %v144
    %v147 = vcosq.f32.pop %v145
    %v148 = vsinq.f32.pop %v145
    %vm149 = vweird.f32 %v38
    %v150 = vadd.s32 %v146, 3
    %v151 = vand.u32 %v150, 3
    %vm152 = vcmp.lt.s32.totalorder %v151, 2
    %vm153 = vcmp.eq.s32.totalorder %v151, 0
    %v154 = vxor.u32 %v148, 2147483648
    %v155 = vsel %vm153, %v147, %v154
    %vm156 = vcmp.eq.s32.totalorder %v151, 2
    %v157 = vxor.u32 %v147, 2147483648
    %v158 = vsel %vm156, %v157, %v148
    %v159 = vsel %vm152, %v155, %v158
    %v160 = vsel %vm149, nan, %v159
    %v161 = vsub.f32 %v35, %v160
    %v162 = vand.u32 2147483647, %v161
    %vm163 = vcmp.lt.f32.partialorder %v162, 1.0
    %v164 = vmul.f32 %v162, 0.5
    %v165 = vmul.f32 %v164, %v162
    %v166 = vsub.f32 %v162, 0.5
    %v167 = vsel %vm163, %v165, %v166
    %v168 = vand.u32 2147483647, %v38
    %vm169 = vcmp.le.f32.partialorder %v168, 0.7853982
    %vm170 = vcmp.lt.s32.totalorder %v38, 0
    %v171 = vand.u32 %v38, 2139095040
    %v172 = vshrl.u32 %v171, 23
    %v173 = vsub.s32 %v172, 127
    %v174 = vand.u32 2147483647, %v38
    %v175 = vand.u32 %v174, 8388607
    %v176 = vor.u32 %v175, 8388608
    %v177 = vsub.s32 0, %v176
    %v178 = vadd.s32 %v173, 1
    %vm179 = vcmp.gt.s32.totalorder %v178, 0
    %v180 = vsel %vm179, %v178, 0
    %v181 = vshrl.u32 %v180, 5
    %v182 = vand.u32 %v180, 31
    %v183 = vsub.s32 32, %v182
    %v184 = vshrl.u32 683565275, %v183
    %v185 = vshll.u32 683565275, %v182
    %v186 = vshrl.u32 2475754826, %v183
    %v187 = vor.u32 %v185, %v186
    %v188 = vshll.u32 2475754826, %v182
    %v189 = vshrl.u32 2131351028, %v183
    %v190 = vor.u32 %v188, %v189
    %v191 = vshll.u32 2131351028, %v182
    %v192 = vshrl.u32 2102212464, %v183
    %v193 = vor.u32 %v191, %v192
    %v194 = vshll.u32 2102212464, %v182
    %v195 = vshrl.u32 920167782, %v183
    %v196 = vor.u32 %v194, %v195
    %v197 = vshll.u32 920167782, %v182
    %v198 = vshrl.u32 1326507024, %v183
    %v199 = vor.u32 %v197, %v198
    %vm200 = vcmp.lt.s32.totalorder %v181, 1
    %vm201 = vcmp.lt.s32.totalorder %v181, 2
    %vm202 = vcmp.lt.s32.totalorder %v181, 3
    %vm203 = vcmp.lt.s32.totalorder %v181, 4
    %v204 = vsel %vm200, %v184, %v187
    %v205 = vsel %vm203, %v193, 2102212464
    %v206 = vsel %vm202, %v190, %v205
    %v207 = vsel %vm201, %v204, %v206
    %v208 = vsel %vm200, %v187, %v190
    %v209 = vsel %vm203, %v196, 920167782
    %v210 = vsel %vm202, %v193, %v209
    %v211 = vsel %vm201, %v208, %v210
    %v212 = vsel %vm200, %v190, %v193
    %v213 = vsel %vm203, %v199, 1326507024
    %v214 = vsel %vm202, %v196, %v213
    %v215 = vsel %vm201, %v212, %v214
    %v216 = vshll.u32 %v176, 8
    %v217 = vmul.u32.u64.compose %v216, %v215
    %v218 = vextract.low.u32 %v217
    %v219 = vextract.high.u32 %v217
    %v220 = vmul.u32.u64.compose %v216, %v211
    %v221 = vextract.low.u32 %v220
    %v222 = vextract.high.u32 %v220
    %v223 = vmul.u32 %v216, %v207
    %v224 = vadd.s32 %v219, %v221
    %vm225 = vc.u32 %v219, %v221
    %v226 = vadd.s32 %v222, 1
    %v227 = vsel %vm225, %v226, %v222
    %v228 = vadd.s32 %v223, %v227
    %v229 = vadd.s32 %v228, 536870912
    %v230 = vshrl.u32 %v229, 30
    %v231 = vshll.u32 %v230, 30
    %v232 = vsub.s32 %v228, %v231
    %vm233 = vcmp.lt.s32.totalorder %v232, 0
    %v234 = vsub.s32 0, %v232
    %v235 = vsel %vm233, %v234, %v232
    %v236 = vclz %v235
    %v237 = vsub.s32 %v236, 2
    %vm238 = vcmp.gt.s32.totalorder 0, %v237
    %v239 = vsel %vm238, 0, %v237
    %v240 = vsub.s32 32, %v239
    %v241 = vshll.u32 %v232, %v239
    %v242 = vshrl.u32 %v224, %v240
    %v243 = vor.u32 %v241, %v242
    %v244 = vsub.s32 4294967266, %v239
    %v245 = vadd.s32 %v244, 127
    %v246 = vshll.u32 %v245, 23
    %v247 = vor.u32 4788187, %v246
    %v248 = vand.u32 2147483647, %v247
    %v250 = vcvt.s32.f32 %v243
    %v251 = vmul.f32 %v250, %v248
    %v252 = vxor.u32 %v251, 2147483648
    %v253 = vsel %vm170, %v252, %v251
    %v254 = vsub.s32 4, %v230
    %v255 = vsel %vm170, %v254, %v230
    %v256 = vsel %vm169, %v38, %v253
    %v257 = vsel %vm169, 0, %v255
    %v258 = vcosq.f32.pop %v256
    %v259 = vsinq.f32.pop %v256
    %vm260 = vweird.f32 %v38
    %v261 = vand.u32 %v257, 3
    %vm262 = vcmp.lt.s32.totalorder %v261, 2
    %vm263 = vcmp.eq.s32.totalorder %v261, 0
    %v264 = vxor.u32 %v259, 2147483648
    %v265 = vsel %vm263, %v258, %v264
    %vm266 = vcmp.eq.s32.totalorder %v261, 2
    %v267 = vxor.u32 %v258, 2147483648
    %v268 = vsel %vm266, %v267, %v259
    %v269 = vsel %vm262, %v265, %v268
    %v270 = vsel %vm260, nan, %v269
    %v271 = vsub.f32 %v36, %v270
    %v272 = vand.u32 2147483647, %v271
    %vm273 = vcmp.lt.f32.partialorder %v272, 1.0
    %v274 = vmul.f32 %v272, 0.5
    %v275 = vmul.f32 %v274, %v272
    %v276 = vsub.f32 %v272, 0.5
    %v277 = vsel %vm273, %v275, %v276
    %v278 = vadd.f32 %v167, %v277
    %v279 = vmul.f32 %v278, %v39
    %v281 = vrot.slane %v279, 6
    %v284 = vrot.slane %v39, 4
    %vm286 = vcmask 1041408
    %v287 = vsel %vm286, %v56, %v281
    %vm288 = vcmask 1043456
    %v289 = vsel %vm288, %v287, %v284
    %v290 = vld [vmem:[#allocation2] sm:$0x3f]
    %vm291 = vcmask 1045504
    %v292 = vsel %vm291, %v289, 0.0
    %293 = vadd.xlane.f32.xlu0 %v292
    %v294 = vpop.xlane.xlu0 %293
    %v295 = vadd.f32 %v290, %v294
    %vm296 = vcmask 5120
    %297 = vst.msk [vmem:[#allocation2] sm:$0x3f] %vm296, %v295
    // Predicated region
    $region18: #{tpu_custom_call.1} parent=1 // pred_check
      %p298 = pneg %p27
    $region19: #{tpu_custom_call.1} parent=1 // pred_check_branch
      %300 = sbr.rel (%p298) target = $region21
    $region20: #{tpu_custom_call.1} parent=1 // pred_region
      %v301 = vld [vmem:[#allocation2] sm:$0x3f]
      %v303 = vrot.slane %v301, 1
      %v305 = vadd.f32 %v301, %v303
      %vm306 = vcmp.gt.f32.partialorder %v301, 0.0
      %v307 = vmax.f32 %v301, 1.0
      %v309 = vrot.slane %v307, 2
      %v311 = vrcp.pop %v309
      %v312 = vmul.f32 %v301, %v311
      %v314 = vrot.slane %v312, 6
      %v316 = vsel %vm306, %v314, 0.0
      %s317 = sld [smem:[#allocation3]]
      %v318 = vstv %s317
      %v319 = vmul.f32 %v305, %v318
      %v321 = vrot.slane %v316, 4
      %v323 = vadd.f32 %v319, %v321
      %v324 = vrot.slane %v316, 5
      %v326 = vadd.f32 %v323, %v324
      %vm327 = vcmask 0
      %328 = vst.msk [vmem:[#allocation7] sm:$0x1] %vm327, %v326
    $region21: #{tpu_custom_call.1} parent=1 // pred_fallthru
      _
    // Predicated region
    $region22: #{tpu_custom_call.1} parent=1 // pred_check
      _
    $region23: #{tpu_custom_call.1} parent=1 // pred_check_branch
      %330 = sbr.rel (0) target = $region25
    $region24: #{tpu_custom_call.1} parent=1 // pred_region
      %s332 = ssub.s32 16, 16
      %333 = vsyncadd [#allocation6], %s332
      %s335 = sshll.u32 [#allocation7], 4
      %s336 = int_to_ptr.vmem [resolvable:$true] %s335
      %338 = dma.vmem_to_hbm [thread:$0]  %s336, 16, %s2, [#allocation6]
    $region25: #{tpu_custom_call.1} parent=1 // pred_fallthru
      _
    // Predicated region
    $region26: #{tpu_custom_call.1} parent=1 // pred_check
      _
    $region27: #{tpu_custom_call.1} parent=1 // pred_check_branch
      %340 = sbr.rel (0) target = $region29
    $region28: #{tpu_custom_call.1} parent=1 // pred_region
      %341 = dma.done [#allocation6], 16
    $region29: #{tpu_custom_call.1} parent=1 // pred_fallthru
      _
    %342 = vsyncpa [#allocation5], 1
    %343 = vsyncpa [#allocation6], 1

</llo_original>
